<compile_context>
chip_gen: v7x
topology: tpu7x:2x2x1
jax: 0.10.0
libtpu: 0.0.40
codegen_flags: <defaults>
</compile_context>

<pallas_src>
import jax
import jax.numpy as jnp
from jax import lax
from jax.experimental import pallas as pl
from jax.experimental.pallas import tpu as pltpu


def _upsample_conv_kernel(x_ref, w_ref, b_ref, o_ref, lhs_ref):
    """Fused 3x3 SAME conv + bias + ReLU (+ baked-in PixelShuffle column perm).

    x_ref  : (1, H, W*Cin)      one image's rows, channel-minor, f32
    w_ref  : (3*W*Cin, OC)      merged banded weights, shuffled columns, bf16
    b_ref  : (1, OC)            bias row matching the shuffled column order, f32
    o_ref  : (1, H, OC)         lane-dense output slab, f32
    lhs_ref: (H, 3*W*Cin)       VMEM scratch: im2row LHS (3 row-shifted copies), f32
    """
    _, h, wc = x_ref.shape
    x = x_ref[0]                                    # (H, W*Cin)

    # --- build the K = 3*W*Cin im2row LHS (one matmul, not three) ----------
    # center tap (dy=1): row h
    lhs_ref[:, wc:2 * wc] = x
    # top tap (dy=0): row h-1; zero only the single halo row
    lhs_ref[1:, 0:wc] = x[:h - 1, :]
    lhs_ref[0:1, 0:wc] = jnp.zeros((1, wc), x.dtype)
    # bottom tap (dy=2): row h+1; zero only the single halo row
    lhs_ref[:h - 1, 2 * wc:3 * wc] = x[1:, :]
    lhs_ref[h - 1:h, 2 * wc:3 * wc] = jnp.zeros((1, wc), x.dtype)

    # --- one bf16 MXU matmul, f32 accumulation ------------------------------
    acc = jnp.dot(lhs_ref[...].astype(jnp.bfloat16), w_ref[...],
                  preferred_element_type=jnp.float32)       # (H, OC)
    acc = acc + b_ref[...]                                   # broadcast (1, OC)
    o_ref[...] = jnp.maximum(acc, 0.0)[None].astype(o_ref.dtype)


def prepare_upsample_params(w_hwio, bias, W, r):
    """Precompute (once) the merged banded weight with the PixelShuffle column
    permutation folded in, plus the matching bias row.

    w_hwio: (3, 3, Cin, Cout) ->  wmat: (3*W*Cin, r*W*r*C) bf16,
                                  brow: (1, r*W*r*C) f32,   with C = Cout/r^2.
    Row index of wmat: (dy, wi, cin); column index: ((i*W + w)*r + j)*C + c,
    i.e. the PixelShuffle sub-row/sub-col/channel order, so the kernel output
    is already pixel-shuffled within each row.
    """
    kh, kw, cin, cout = w_hwio.shape
    C = cout // (r * r)
    wo = jnp.arange(W)
    wi = wo[None, :] + jnp.arange(kw)[:, None] - (kw // 2)            # (kw, Wo)
    onehot = (wi[:, :, None] == jnp.arange(W)[None, None, :])         # (kw, Wo, Wi)
    onehot = onehot.astype(w_hwio.dtype)                              # OOB wi -> all-zero (SAME pad)
    # band[dy, wi, ci, wo, co] = w[dy, wi-wo+1, ci, co] for |wi-wo|<=1 else 0
    band = jnp.einsum('xwi,yxco->yicwo', onehot, w_hwio)              # (kh, Wi, cin, Wo, cout)
    band = band.reshape(kh * W * cin, W, C, r, r)                     # cols: (wo, c, i, j)
    band = jnp.transpose(band, (0, 3, 1, 4, 2))                       # cols: (i, wo, j, c)
    wmat = band.reshape(kh * W * cin, r * W * r * C).astype(jnp.bfloat16)

    b = jnp.broadcast_to(bias.reshape(1, C, r, r), (W, C, r, r))      # (wo, c, i, j)
    brow = jnp.transpose(b, (2, 0, 3, 1)).reshape(1, r * W * r * C)   # (i, wo, j, c)
    return wmat, brow.astype(jnp.float32)


def upsample_block_forward(x_nchw, wmat, brow, r):
    """Full UpsampleBlock forward.  x_nchw: (N, Cin, H, W), PyTorch layout."""
    N, Cin, H, W = x_nchw.shape
    WC = W * Cin
    OC = wmat.shape[1]
    C = OC // (W * r * r)

    # Channel-minor rows (single small input transpose; everything downstream
    # of the kernel is lane-dense).
    x3 = jnp.transpose(x_nchw, (0, 2, 3, 1)).reshape(N, H, WC)

    grid_spec = pltpu.PrefetchScalarGridSpec(
        num_scalar_prefetch=0,
        grid=(N,),                       # one image per step -> independent halos
        in_specs=[
            pl.BlockSpec((1, H, WC), lambda n: (n, 0, 0)),
            pl.BlockSpec((3 * WC, OC), lambda n: (0, 0)),
            pl.BlockSpec((1, OC), lambda n: (0, 0)),
        ],
        out_specs=pl.BlockSpec((1, H, OC), lambda n: (n, 0, 0)),
        scratch_shapes=[pltpu.VMEM((H, 3 * WC), jnp.float32)],
    )
    y = pl.pallas_call(
        _upsample_conv_kernel,
        out_shape=jax.ShapeDtypeStruct((N, H, OC), jnp.float32),
        grid_spec=grid_spec,
        compiler_params=pltpu.CompilerParams(
            dimension_semantics=("parallel",)),   # both TCs on v7x
    )(x3, wmat, brow)

    # PixelShuffle permutation is already baked into the column order ->
    # pure reshape to NHWC, then a single NHWC->NCHW layout transpose.
    y_nhwc = y.reshape(N, H * r, W * r, C)
    return jnp.transpose(y_nhwc, (0, 3, 1, 2))


def upsample_block_reference(x_nchw, w_hwio, bias, scale_factor):
    """Pure-JAX reference (matches torch: conv -> pixel_shuffle -> relu)."""
    w_oihw = jnp.transpose(w_hwio, (3, 2, 0, 1))
    y = lax.conv_general_dilated(
        x_nchw, w_oihw, window_strides=(1, 1), padding="SAME",
        dimension_numbers=("NCHW", "OIHW", "NCHW"))
    y = y + bias[None, :, None, None]
    N, Crr, H, W = y.shape
    r = scale_factor
    C = Crr // (r * r)
    y = y.reshape(N, C, r, r, H, W)
    y = jnp.transpose(y, (0, 1, 4, 2, 5, 3)).reshape(N, C, H * r, W * r)
    return jnp.maximum(y, 0.0)


if __name__ == "__main__":
    # Module config: in_channels=4, out_channels=16 (conv), scale_factor=2
    # => final output channels = 16 / 2^2 = 4, spatial upsampled 2x.
    N, Cin, H, W = 2, 4, 16, 16
    Cout, r = 16, 2

    key = jax.random.PRNGKey(0)
    kx, kw, kb = jax.random.split(key, 3)
    x = jax.random.normal(kx, (N, Cin, H, W), dtype=jnp.float32)
    # Deterministic synthetic parameters (Conv2d weight in HWIO layout).
    w_hwio = 0.1 * jax.random.normal(kw, (3, 3, Cin, Cout), dtype=jnp.float32)
    bias = 0.1 * jax.random.normal(kb, (Cout,), dtype=jnp.float32)

    # Static weight prep hoisted out of the per-forward path (computed once).
    wmat, brow = prepare_upsample_params(w_hwio, bias, W, r)

    out = upsample_block_forward(x, wmat, brow, r)
    out = jax.block_until_ready(out)

    ref = upsample_block_reference(x, w_hwio, bias, r)
    assert out.shape == (N, Cout // (r * r), H * r, W * r), out.shape
    max_err = float(jnp.max(jnp.abs(out - ref)))
    # bf16 MXU operands -> loosened tolerance vs. the f32 reference.
    assert jnp.allclose(out, ref, atol=3e-2, rtol=3e-2), max_err

    print("KERNEL_OK")
</pallas_src>

<mosaic_0001>
module attributes {stable_mosaic.version = 11 : i64} {
  func.func @_upsample_conv_kernel(%arg0: i32, %arg1: memref<1x16x64xf32, #tpu.memory_space<vmem>>, %arg2: memref<192x256xbf16, #tpu.memory_space<vmem>>, %arg3: memref<1x256xf32, #tpu.memory_space<vmem>>, %arg4: memref<1x16x256xf32, #tpu.memory_space<vmem>>, %arg5: memref<16x192xf32, #tpu.memory_space<vmem>>) attributes {dimension_semantics = [#tpu.dimension_semantics<parallel>], iteration_bounds = array<i64: 2>, scalar_prefetch = 0 : i64, scratch_operands = 1 : i64, tpu.core_type = #tpu.core_type<tc>, window_params = [{transform_indices = @transform_0, window_bounds = array<i64: 1, 16, 64>}, {pipeline_mode = #tpu.pipeline_mode<synchronous>, transform_indices = @transform_1, window_bounds = array<i64: 192, 256>}, {pipeline_mode = #tpu.pipeline_mode<synchronous>, transform_indices = @transform_2, window_bounds = array<i64: 1, 256>}, {transform_indices = @transform_3, window_bounds = array<i64: 1, 16, 256>}]} {
    %c0 = arith.constant 0 : index
    %c0_0 = arith.constant 0 : index
    %c0_1 = arith.constant 0 : index
    %0 = vector.load %arg1[%c0, %c0_0, %c0_1] : memref<1x16x64xf32, #tpu.memory_space<vmem>>, vector<1x16x64xf32>
    %1 = vector.shape_cast %0 : vector<1x16x64xf32> to vector<16x64xf32>
    %c0_2 = arith.constant 0 : index
    %c64 = arith.constant 64 : index
    %2 = vector.load %arg5[%c0_2, %c64] : memref<16x192xf32, #tpu.memory_space<vmem>>, vector<16x64xf32>
    tpu.vector_store %arg5[%c0_2, %c64], %1 {strides = array<i32>} : memref<16x192xf32, #tpu.memory_space<vmem>>, vector<16x64xf32>,
    %3 = vector.extract_strided_slice %1 {offsets = [0, 0], sizes = [15, 64], strides = [1, 1]} : vector<16x64xf32> to vector<15x64xf32>
    %c1 = arith.constant 1 : index
    %c0_3 = arith.constant 0 : index
    %4 = vector.load %arg5[%c1, %c0_3] : memref<16x192xf32, #tpu.memory_space<vmem>>, vector<15x64xf32>
    tpu.vector_store %arg5[%c1, %c0_3], %3 {strides = array<i32>} : memref<16x192xf32, #tpu.memory_space<vmem>>, vector<15x64xf32>,
    %cst = arith.constant 0.000000e+00 : f32
    %5 = vector.broadcast %cst : f32 to vector<1x64xf32>
    %c0_4 = arith.constant 0 : index
    %c0_5 = arith.constant 0 : index
    %6 = vector.load %arg5[%c0_4, %c0_5] : memref<16x192xf32, #tpu.memory_space<vmem>>, vector<1x64xf32>
    tpu.vector_store %arg5[%c0_4, %c0_5], %5 {strides = array<i32>} : memref<16x192xf32, #tpu.memory_space<vmem>>, vector<1x64xf32>,
    %7 = vector.extract_strided_slice %1 {offsets = [1, 0], sizes = [15, 64], strides = [1, 1]} : vector<16x64xf32> to vector<15x64xf32>
    %c0_6 = arith.constant 0 : index
    %c128 = arith.constant 128 : index
    %8 = vector.load %arg5[%c0_6, %c128] : memref<16x192xf32, #tpu.memory_space<vmem>>, vector<15x64xf32>
    tpu.vector_store %arg5[%c0_6, %c128], %7 {strides = array<i32>} : memref<16x192xf32, #tpu.memory_space<vmem>>, vector<15x64xf32>,
    %cst_7 = arith.constant 0.000000e+00 : f32
    %9 = vector.broadcast %cst_7 : f32 to vector<1x64xf32>
    %c15 = arith.constant 15 : index
    %c128_8 = arith.constant 128 : index
    %10 = vector.load %arg5[%c15, %c128_8] : memref<16x192xf32, #tpu.memory_space<vmem>>, vector<1x64xf32>
    tpu.vector_store %arg5[%c15, %c128_8], %9 {strides = array<i32>} : memref<16x192xf32, #tpu.memory_space<vmem>>, vector<1x64xf32>,
    %c0_9 = arith.constant 0 : index
    %c0_10 = arith.constant 0 : index
    %11 = vector.load %arg5[%c0_9, %c0_10] : memref<16x192xf32, #tpu.memory_space<vmem>>, vector<16x192xf32>
    %12 = arith.truncf %11 : vector<16x192xf32> to vector<16x192xbf16>
    %c0_11 = arith.constant 0 : index
    %c0_12 = arith.constant 0 : index
    %13 = vector.load %arg2[%c0_11, %c0_12] : memref<192x256xbf16, #tpu.memory_space<vmem>>, vector<192x256xbf16>
    %cst_13 = arith.constant dense<0.000000e+00> : vector<16x256xf32>
    %14 = tpu.matmul %12, %13, %cst_13 {dimension_numbers = #tpu.dot_dimension_numbers<[1], [0], [0], [1], [0, 0, 1, 1], [], []>} : vector<16x192xbf16>, vector<192x256xbf16>, vector<16x256xf32> -> vector<16x256xf32>
    %c0_14 = arith.constant 0 : index
    %c0_15 = arith.constant 0 : index
    %15 = vector.load %arg3[%c0_14, %c0_15] : memref<1x256xf32, #tpu.memory_space<vmem>>, vector<1x256xf32>
    %16 = vector.broadcast %15 : vector<1x256xf32> to vector<16x256xf32>
    %17 = arith.addf %14, %16 : vector<16x256xf32>
    %cst_16 = arith.constant 0.000000e+00 : f32
    %18 = vector.broadcast %cst_16 : f32 to vector<16x256xf32>
    %19 = arith.maximumf %17, %18 : vector<16x256xf32>
    %20 = vector.shape_cast %19 : vector<16x256xf32> to vector<1x16x256xf32>
    %c0_17 = arith.constant 0 : index
    %c0_18 = arith.constant 0 : index
    %c0_19 = arith.constant 0 : index
    %21 = vector.load %arg4[%c0_17, %c0_18, %c0_19] : memref<1x16x256xf32, #tpu.memory_space<vmem>>, vector<1x16x256xf32>
    tpu.vector_store %arg4[%c0_17, %c0_18, %c0_19], %20 {strides = array<i32>} : memref<1x16x256xf32, #tpu.memory_space<vmem>>, vector<1x16x256xf32>,
    return
  }
  func.func @transform_0(%arg0: i32) -> (i32, i32, i32) {
    %c0_i32 = arith.constant 0 : i32
    %c0_i32_0 = arith.constant 0 : i32
    %c0_i32_1 = arith.constant 0 : i32
    return %arg0, %c0_i32, %c0_i32_0 : i32, i32, i32
  }
  func.func @transform_1(%arg0: i32) -> (i32, i32) {
    %c0_i32 = arith.constant 0 : i32
    %c0_i32_0 = arith.constant 0 : i32
    %c0_i32_1 = arith.constant 0 : i32
    return %c0_i32, %c0_i32_0 : i32, i32
  }
  func.func @transform_2(%arg0: i32) -> (i32, i32) {
    %c0_i32 = arith.constant 0 : i32
    %c0_i32_0 = arith.constant 0 : i32
    %c0_i32_1 = arith.constant 0 : i32
    return %c0_i32, %c0_i32_0 : i32, i32
  }
  func.func @transform_3(%arg0: i32) -> (i32, i32, i32) {
    %c0_i32 = arith.constant 0 : i32
    %c0_i32_0 = arith.constant 0 : i32
    %c0_i32_1 = arith.constant 0 : i32
    return %arg0, %c0_i32, %c0_i32_0 : i32, i32, i32
  }
}

</mosaic_0001>

<llo_original>
// kernel: tpu_custom_call.1
$region0: #{tpu_custom_call.1}
  #allocation0 [shape = 'u32[]', space=smem, size = 0x4, offset = 0x4, fixed_abs, tag = 'smem constant byte address 0x4 - core index']
  #allocation1 [shape = 'u32[144,128]{1,0:T(1,128)}', space=vmem, size = 0x12000, scoped, tag = 'internal scratch']
  #allocation2 [shape = 'f32[16,192]{1,0:T(8,128)}', space=vmem, size = 0x4000, scoped, tag = 'scratch operand']
  %s0 = inlined_call_operand.hbm [shape: f32[2,16,64], index: 0, kind: input, shape index: {}]
  %s1 = inlined_call_operand.hbm [shape: bf16[192,256], index: 1, kind: input, shape index: {}]
  %s2 = inlined_call_operand.vmem [shape: f32[1,256], index: 2, kind: input, shape index: {}]
  %s3 = inlined_call_operand.hbm [shape: f32[2,16,256], index: 3, kind: output, shape index: {}]
  %s4 = sld [smem:[#allocation0]]
  $region53: #{tpu_custom_call.1} parent=0
    _
  %s6 = ssub.s32 1, %s4
  %s7 = scalar_select 0, %s6, %s4
  $region1: #{tpu_custom_call.1} parent=0
    #allocation3 [shape = 'u8[16384]{0}', space=vmem, size = 0x4000, scoped, tag = 'input window, operand 0']
    #allocation4 [shape = 's32[2]{0}', space=sflag, size = 0x8, scoped, tag = 'scoped memory for tpu_custom_call.1']
    #allocation5 [shape = 's32[2]{0}', space=sflag, size = 0x8, scoped, tag = 'scoped memory for tpu_custom_call.1']
    #allocation6 [shape = 'u8[98304]{0}', space=vmem, size = 0x18000, scoped, tag = 'input window, operand 1, single buffered']
    #allocation7 [shape = 's32[1]{0}', space=sflag, size = 0x4, scoped, tag = 'scoped memory for tpu_custom_call.1']
    #allocation8 [shape = 'u8[32768]{0}', space=vmem, size = 0x8000, scoped, tag = 'output window, operand 0']
    %8 = vsyncpa [#allocation4], 0
    %s9 = scalar_lea.sflag [#allocation4], 1
    %10 = vsyncpa %s9, 0
    %11 = vsyncpa [#allocation7], 0
    %12 = vsyncpa [#allocation5], 0
    %s13 = scalar_lea.sflag [#allocation5], 1
    %14 = vsyncpa %s13, 0
    loop: start=0, step=1, limit=4
    $region2: #{tpu_custom_call.1} parent=1 // loop_pre_header
      _
    $region3: #{tpu_custom_call.1} parent=1 // loop_header
      %s16 = sphi 0, %s20
      %p17 = scmp.ge.s32.totalorder %s16, 4
      %s26 = sphi 0, %s28
      %s29 = sphi 0, %s26
      %s30 = sphi 0, %s29
      %s46 = sphi 0, %s30
      %s50 = sphi 0, %s50
      %s52 = sphi 0, %s50
      %s53 = sphi 0, %s52
      %s67 = sphi 0, %s53
      %s71 = sphi 0, %s71
      %s73 = sphi 0, %s71
      %s74 = sphi 0, %s73
      %s88 = sphi 0, %s74
      %s94 = sphi 0, %s96
      %s97 = sphi 0, %s94
      %s98 = sphi 0, %s97
      %s114 = sphi 0, %s98
    $region4: #{tpu_custom_call.1} parent=1 // loop_header_branch
      %19 = sbr.rel (%p17) target = $region8
    $region5: #{tpu_custom_call.1} parent=1 // loop_body
      %s21 = ssub.s32 %s16, 1
      %s22 = ssub.s32 %s16, 2
      %s23 = sadd.s32 %s16, 1
      %s24 = ssub.s32 %s16, %s23
      %p25 = scmp.eq.s32.totalorder %s24, 0
      %s27 = sadd.s32 %s26, 1
      %s28 = scalar_select %p25, %s26, %s27
      %p31 = pneg %p25
      %p32 = scmp.eq.s32.totalorder %s16, 1
      %p33 = por %p31, %p32
      %p34 = scmp.ne.s32.totalorder %s26, %s29
      %p35 = scmp.eq.s32.totalorder %s16, 0
      %p36 = por %p34, %p35
      %p37 = scmp.ne.s32.totalorder %s26, %s29
      %p38 = scmp.eq.s32.totalorder %s21, 1
      %p39 = por %p37, %p38
      %p40 = scmp.ne.s32.totalorder %s29, %s30
      %p41 = scmp.eq.s32.totalorder %s21, 0
      %p42 = por %p40, %p41
      %p43 = scmp.ne.s32.totalorder %s29, %s30
      %p44 = scmp.eq.s32.totalorder %s22, 1
      %p45 = por %p43, %p44
      %p47 = scmp.ne.s32.totalorder %s30, %s46
      %p48 = scmp.eq.s32.totalorder %s22, 0
      %p49 = por %p47, %p48
      %s51 = sadd.s32 %s50, 1
      %p54 = scmp.eq.s32.totalorder %s16, 1
      %p55 = scmp.ne.s32.totalorder %s50, %s52
      %p56 = scmp.eq.s32.totalorder %s16, 0
      %p57 = por %p55, %p56
      %p58 = scmp.ne.s32.totalorder %s50, %s52
      %p59 = scmp.eq.s32.totalorder %s21, 1
      %p60 = por %p58, %p59
      %p61 = scmp.ne.s32.totalorder %s52, %s53
      %p62 = scmp.eq.s32.totalorder %s21, 0
      %p63 = por %p61, %p62
      %p64 = scmp.ne.s32.totalorder %s52, %s53
      %p65 = scmp.eq.s32.totalorder %s22, 1
      %p66 = por %p64, %p65
      %p68 = scmp.ne.s32.totalorder %s53, %s67
      %p69 = scmp.eq.s32.totalorder %s22, 0
      %p70 = por %p68, %p69
      %s72 = sadd.s32 %s71, 1
      %p75 = scmp.eq.s32.totalorder %s16, 1
      %p76 = scmp.ne.s32.totalorder %s71, %s73
      %p77 = scmp.eq.s32.totalorder %s16, 0
      %p78 = por %p76, %p77
      %p79 = scmp.ne.s32.totalorder %s71, %s73
      %p80 = scmp.eq.s32.totalorder %s21, 1
      %p81 = por %p79, %p80
      %p82 = scmp.ne.s32.totalorder %s73, %s74
      %p83 = scmp.eq.s32.totalorder %s21, 0
      %p84 = por %p82, %p83
      %p85 = scmp.ne.s32.totalorder %s73, %s74
      %p86 = scmp.eq.s32.totalorder %s22, 1
      %p87 = por %p85, %p86
      %p89 = scmp.ne.s32.totalorder %s74, %s88
      %p90 = scmp.eq.s32.totalorder %s22, 0
      %p91 = por %p89, %p90
      %s92 = ssub.s32 %s16, %s23
      %p93 = scmp.eq.s32.totalorder %s92, 0
      %s95 = sadd.s32 %s94, 1
      %s96 = scalar_select %p93, %s94, %s95
      %p99 = pneg %p93
      %p100 = scmp.eq.s32.totalorder %s16, 1
      %p101 = por %p99, %p100
      %p102 = scmp.ne.s32.totalorder %s94, %s97
      %p103 = scmp.eq.s32.totalorder %s16, 0
      %p104 = por %p102, %p103
      %p105 = scmp.ne.s32.totalorder %s94, %s97
      %p106 = scmp.eq.s32.totalorder %s21, 1
      %p107 = por %p105, %p106
      %p108 = scmp.ne.s32.totalorder %s97, %s98
      %p109 = scmp.eq.s32.totalorder %s21, 0
      %p110 = por %p108, %p109
      %p111 = scmp.ne.s32.totalorder %s97, %s98
      %p112 = scmp.eq.s32.totalorder %s22, 1
      %p113 = por %p111, %p112
      %p115 = scmp.ne.s32.totalorder %s98, %s114
      %p116 = scmp.eq.s32.totalorder %s22, 0
      %p117 = por %p115, %p116
      %p118 = scmp.le.s32.totalorder 1, %s16
      %p119 = scmp.lt.s32.totalorder %s16, 3
      %p120 = pnand %p118, %p119
      %p121 = pneg %p120
      // Predicated region
      $region9: #{tpu_custom_call.1} parent=5 // pred_check
        _
      $region10: #{tpu_custom_call.1} parent=5 // pred_check_branch
        %123 = sbr.rel (%p120) target = $region12
      $region11: #{tpu_custom_call.1} parent=5 // pred_region
        %s124 = ssub.s32 %s16, 1
        // Predicated region
        $region13: #{tpu_custom_call.1} parent=11 // pred_check
          %p125 = pneg %p63
        $region14: #{tpu_custom_call.1} parent=11 // pred_check_branch
          %127 = sbr.rel (%p125) target = $region16
        $region15: #{tpu_custom_call.1} parent=11 // pred_region
          %s129 = ssub.s32 3072, 3072
          %130 = vsyncadd [#allocation7], %s129
          %s131 = sshll.u32 [#allocation6], 4
          %s132 = int_to_ptr.vmem [resolvable:$true] %s131
          %137 = dma.hbm_to_vmem [thread:$0]  %s1, 3072, %s132, [#allocation7], 128, 128, 8
        $region16: #{tpu_custom_call.1} parent=11 // pred_fallthru
          _
        // Predicated region
        $region17: #{tpu_custom_call.1} parent=11 // pred_check
          %p138 = pneg %p84
        $region18: #{tpu_custom_call.1} parent=11 // pred_check_branch
          %140 = sbr.rel (%p138) target = $region20
        $region19: #{tpu_custom_call.1} parent=11 // pred_region
          _
        $region20: #{tpu_custom_call.1} parent=11 // pred_fallthru
          _
      $region12: #{tpu_custom_call.1} parent=5 // pred_fallthru
        _
      %p141 = scmp.lt.s32.totalorder %s16, 2
      // Predicated region
      $region21: #{tpu_custom_call.1} parent=5 // pred_check
        %p142 = pneg %p141
      $region22: #{tpu_custom_call.1} parent=5 // pred_check_branch
        %144 = sbr.rel (%p142) target = $region24
      $region23: #{tpu_custom_call.1} parent=5 // pred_region
        // Predicated region
        $region25: #{tpu_custom_call.1} parent=23 // pred_check
          %p145 = pneg %p36
        $region26: #{tpu_custom_call.1} parent=23 // pred_check_branch
          %147 = sbr.rel (%p145) target = $region28
        $region27: #{tpu_custom_call.1} parent=23 // pred_region
          %s148 = sand.u32 %s26, 1
          %s149 = scalar_lea.sflag [#allocation4], %s148
          %s150 = sand.u32 %s26, 1
          %s151 = smul.addr %s150, 16
          %s152 = scalar_lea.vmem [#allocation3], %s151
          %s154 = ssub.s32 256, 256
          %155 = vsyncadd %s149, %s154
          %s156 = smul.addr %s16, 2
          %s157 = smul.addr %s156, 128
          %s158 = scalar_lea.hbm %s0, %s157
          %s159 = sshll.u32 %s152, 4
          %s160 = int_to_ptr.vmem [resolvable:$true] %s159
          %165 = dma.hbm_to_vmem [thread:$0]  %s158, 256, %s160, %s149, 128, 128, 8
        $region28: #{tpu_custom_call.1} parent=23 // pred_fallthru
          _
      $region24: #{tpu_custom_call.1} parent=5 // pred_fallthru
        _
      %p166 = scmp.le.s32.totalorder 1, %s16
      %p167 = scmp.lt.s32.totalorder %s16, 3
      %p168 = pnand %p166, %p167
      %p169 = pneg %p168
      // Predicated region
      $region29: #{tpu_custom_call.1} parent=5 // pred_check
        _
      $region30: #{tpu_custom_call.1} parent=5 // pred_check_branch
        %171 = sbr.rel (%p168) target = $region32
      $region31: #{tpu_custom_call.1} parent=5 // pred_region
        %s172 = ssub.s32 %s16, 1
        %s173 = sand.u32 %s29, 1
        %s174 = scalar_lea.sflag [#allocation4], %s173
        %s175 = sand.u32 %s29, 1
        %s176 = smul.addr %s175, 16
        %s177 = scalar_lea.vmem [#allocation3], %s176
        // Predicated region
        $region33: #{tpu_custom_call.1} parent=31 // pred_check
          %p178 = pneg %p42
        $region34: #{tpu_custom_call.1} parent=31 // pred_check_branch
          %180 = sbr.rel (%p178) target = $region36
        $region35: #{tpu_custom_call.1} parent=31 // pred_region
          %181 = dma.done %s174, 256
        $region36: #{tpu_custom_call.1} parent=31 // pred_fallthru
          _
        // Predicated region
        $region37: #{tpu_custom_call.1} parent=31 // pred_check
          %p182 = pneg %p63
        $region38: #{tpu_custom_call.1} parent=31 // pred_check_branch
          %184 = sbr.rel (%p182) target = $region40
        $region39: #{tpu_custom_call.1} parent=31 // pred_region
          %185 = dma.done [#allocation7], 3072
        $region40: #{tpu_custom_call.1} parent=31 // pred_fallthru
          _
        %s186 = sand.u32 %s29, 1
        %s187 = scalar_lea.sflag [#allocation4], %s186
        %s188 = sand.u32 %s29, 1
        %s189 = smul.addr %s188, 16
        %s190 = scalar_lea.vmem [#allocation3], %s189
        %p191 = pneg %p42
        %p192 = pneg %p39
        %p193 = pneg %p63
        %p194 = pneg %p60
        %p195 = pneg %p84
        %p196 = pneg %p81
        %p197 = pneg %p110
        %p198 = pneg %p107
        %s199 = sand.u32 %s97, 1
        %s200 = scalar_lea.sflag [#allocation5], %s199
        %s201 = sand.u32 %s97, 1
        %s202 = smul.addr %s201, 32
        %s203 = scalar_lea.vmem [#allocation8], %s202
        %v205 = vld [vmem:[%s177] sm:$0xff]
        %v206 = vld [vmem:[%s177 + $0x8] sm:$0xff]
        %209 = vrot.lane.b32.xlu0 %v205, 64
        %v210 = vpop.permute.xlu0 %209
        %211 = vrot.lane.b32.xlu0 %v206, 64
        %v212 = vpop.permute.xlu0 %211
        %vm215 = vcmask 1048064
        %216 = vst.msk [vmem:[#allocation2] sm:$0xff] %vm215, %v210
        %217 = vst.msk [vmem:[#allocation2 + $0x10] sm:$0xff] %vm215, %v212
        %vm218 = vcmask 1040384
        %v219 = vrot.slane %v205, 7
        %v220 = vrot.slane %v206, 7
        %v221 = vsel %vm218, %v219, %v220
        %vm224 = vcmask 523265
        %225 = vst.msk [vmem:[#allocation2] sm:$0xfe] %vm224, %v219
        %vm226 = vcmask 523264
        %227 = vst.msk [vmem:[#allocation2 + $0x10] sm:$0xff] %vm226, %v221
        %vm228 = vcmask 516096
        %229 = vst.msk [vmem:[#allocation2] sm:$0x1] %vm228, 0.0
        %vm230 = vcmask 1046528
        %v231 = vrot.slane %v205, 1
        %v232 = vrot.slane %v206, 1
        %v233 = vsel %vm230, %v231, %v232
        %236 = vst.msk [vmem:[#allocation2 + $0x8] sm:$0xff] %vm226, %v233
        %vm237 = vcmask 522240
        %238 = vst.msk [vmem:[#allocation2 + $0x18] sm:$0x7f] %vm237, %v232
        %239 = vst.msk [vmem:[#allocation2 + $0x1f] sm:$0x1] %vm228, 0.0
        %v240 = vld [vmem:[#allocation2] sm:$0xff]
        %v241 = vld [vmem:[#allocation2 + $0x8] sm:$0xff]
        %v242 = vld [vmem:[#allocation2 + $0x10] sm:$0xff]
        %v243 = vld [vmem:[#allocation2 + $0x18] sm:$0xff]
        %v244 = vpack.c.bf16 %v242, %v240
        %v245 = vpack.c.bf16 %v243, %v241
        %v246 = vld [vmem:[#allocation6] sm:$0xff]
        %v247 = vld [vmem:[#allocation6 + $0x8] sm:$0xff]
        %v248 = vld [vmem:[#allocation6 + $0x10] sm:$0xff]
        %v249 = vld [vmem:[#allocation6 + $0x18] sm:$0xff]
        %v250 = vld [vmem:[#allocation6 + $0x20] sm:$0xff]
        %v251 = vld [vmem:[#allocation6 + $0x28] sm:$0xff]
        %v252 = vld [vmem:[#allocation6 + $0x30] sm:$0xff]
        %v253 = vld [vmem:[#allocation6 + $0x38] sm:$0xff]
        %v254 = vld [vmem:[#allocation6 + $0x40] sm:$0xff]
        %v255 = vld [vmem:[#allocation6 + $0x48] sm:$0xff]
        %v256 = vld [vmem:[#allocation6 + $0x50] sm:$0xff]
        %v257 = vld [vmem:[#allocation6 + $0x58] sm:$0xff]
        %v258 = vld [vmem:[#allocation6 + $0x60] sm:$0xff]
        %v259 = vld [vmem:[#allocation6 + $0x68] sm:$0xff]
        %v260 = vld [vmem:[#allocation6 + $0x70] sm:$0xff]
        %v261 = vld [vmem:[#allocation6 + $0x78] sm:$0xff]
        %v262 = vld [vmem:[#allocation6 + $0x80] sm:$0xff]
        %v263 = vld [vmem:[#allocation6 + $0x88] sm:$0xff]
        %v264 = vld [vmem:[#allocation6 + $0x90] sm:$0xff]
        %v265 = vld [vmem:[#allocation6 + $0x98] sm:$0xff]
        %v266 = vld [vmem:[#allocation6 + $0xa0] sm:$0xff]
        %v267 = vld [vmem:[#allocation6 + $0xa8] sm:$0xff]
        %v268 = vld [vmem:[#allocation6 + $0xb0] sm:$0xff]
        %v269 = vld [vmem:[#allocation6 + $0xb8] sm:$0xff]
        %v270 = vld [vmem:[%s2] sm:$0x3]
        %v272 = vlaneseq
        %v273 = vshrl.u32 %v272, 7
        %v274 = vsub.s32 0, %v273
        %v275 = vrot.slane %v270, %v274
        %v276 = vlaneseq
        %v277 = vshrl.u32 %v276, 7
        %v278 = vsub.s32 1, %v277
        %v279 = vrot.slane %v270, %v278
        %v306 = vunpack.c.l.b16 %v246
        %v307 = vunpack.c.h.b16 %v246
        %v308 = vunpack.c.l.b16 %v247
        %v309 = vunpack.c.h.b16 %v247
        %v310 = vunpack.c.l.b16 %v248
        %v311 = vunpack.c.h.b16 %v248
        %v312 = vunpack.c.l.b16 %v249
        %v313 = vunpack.c.h.b16 %v249
        %v314 = vunpack.c.l.b16 %v250
        %v315 = vunpack.c.h.b16 %v250
        %v316 = vunpack.c.l.b16 %v251
        %v317 = vunpack.c.h.b16 %v251
        %v318 = vunpack.c.l.b16 %v252
        %v319 = vunpack.c.h.b16 %v252
        %v320 = vunpack.c.l.b16 %v253
        %v321 = vunpack.c.h.b16 %v253
        %v322 = vunpack.c.l.b16 %v254
        %v323 = vunpack.c.h.b16 %v254
        %v324 = vunpack.c.l.b16 %v255
        %v325 = vunpack.c.h.b16 %v255
        %v326 = vunpack.c.l.b16 %v256
        %v327 = vunpack.c.h.b16 %v256
        %v328 = vunpack.c.l.b16 %v257
        %v329 = vunpack.c.h.b16 %v257
        %v330 = vunpack.c.l.b16 %v258
        %v331 = vunpack.c.h.b16 %v258
        %v332 = vunpack.c.l.b16 %v259
        %v333 = vunpack.c.h.b16 %v259
        %v334 = vunpack.c.l.b16 %v260
        %v335 = vunpack.c.h.b16 %v260
        %v336 = vunpack.c.l.b16 %v261
        %v337 = vunpack.c.h.b16 %v261
        %v338 = vunpack.c.l.b16 %v262
        %v339 = vunpack.c.h.b16 %v262
        %v340 = vunpack.c.l.b16 %v263
        %v341 = vunpack.c.h.b16 %v263
        %v342 = vunpack.c.l.b16 %v264
        %v343 = vunpack.c.h.b16 %v264
        %v344 = vunpack.c.l.b16 %v265
        %v345 = vunpack.c.h.b16 %v265
        %v346 = vunpack.c.l.b16 %v266
        %v347 = vunpack.c.h.b16 %v266
        %v348 = vunpack.c.l.b16 %v267
        %v349 = vunpack.c.h.b16 %v267
        %v350 = vunpack.c.l.b16 %v268
        %v351 = vunpack.c.h.b16 %v268
        %v352 = vunpack.c.l.b16 %v269
        %v353 = vunpack.c.h.b16 %v269
        %v354 = vpack.c.b16 %v308, %v306
        %v355 = vpack.c.b16 %v309, %v307
        %v356 = vpack.c.b16 %v312, %v310
        %v357 = vpack.c.b16 %v313, %v311
        %v358 = vpack.c.b16 %v316, %v314
        %v359 = vpack.c.b16 %v317, %v315
        %v360 = vpack.c.b16 %v320, %v318
        %v361 = vpack.c.b16 %v321, %v319
        %v362 = vpack.c.b16 %v324, %v322
        %v363 = vpack.c.b16 %v325, %v323
        %v364 = vpack.c.b16 %v328, %v326
        %v365 = vpack.c.b16 %v329, %v327
        %v366 = vpack.c.b16 %v332, %v330
        %v367 = vpack.c.b16 %v333, %v331
        %v368 = vpack.c.b16 %v336, %v334
        %v369 = vpack.c.b16 %v337, %v335
        %v370 = vpack.c.b16 %v340, %v338
        %v371 = vpack.c.b16 %v341, %v339
        %v372 = vpack.c.b16 %v344, %v342
        %v373 = vpack.c.b16 %v345, %v343
        %v374 = vpack.c.b16 %v348, %v346
        %v375 = vpack.c.b16 %v349, %v347
        %v376 = vpack.c.b16 %v352, %v350
        %v377 = vpack.c.b16 %v353, %v351
        %v403 = vsel %vm226, %v245, 0
        %405 = vmatprep.subr.bf16.mxu0 %v355
        %406 = vmatpush1.bf16.msra.mxu0 %v354
        %407 = vmatprep.subr.bf16.mxu0 %v357
        %408 = vmatpush1.bf16.msra.mxu0 %v356
        %409 = vmatprep.subr.bf16.mxu0 %v359
        %410 = vmatpush1.bf16.msra.mxu0 %v358
        %411 = vmatprep.subr.bf16.mxu0 %v361
        %412 = vmatpush1.bf16.msra.mxu0 %v360
        %413 = vmatprep.subr.bf16.mxu0 %v363
        %414 = vmatpush1.bf16.msra.mxu0 %v362
        %415 = vmatprep.subr.bf16.mxu0 %v365
        %416 = vmatpush1.bf16.msra.mxu0 %v364
        %417 = vmatprep.subr.bf16.mxu0 %v367
        %418 = vmatpush1.bf16.msra.mxu0 %v366
        %419 = vmatprep.subr.bf16.mxu0 %v369
        %420 = vmatpush1.bf16.msra.mxu0 %v368
        %421 = vmatprep.subr.bf16.mxu0 %v371
        %422 = vmatpush1.bf16.msra.mxu0 %v370
        %423 = vmatprep.subr.bf16.mxu0 %v373
        %424 = vmatpush1.bf16.msra.mxu0 %v372
        %425 = vmatprep.subr.bf16.mxu0 %v375
        %426 = vmatpush1.bf16.msra.mxu0 %v374
        %427 = vmatprep.subr.bf16.mxu0 %v377
        %428 = vmatpush1.bf16.msra.mxu0 %v376
        %429 = vmatprep.subr.bf16.mxu0 0
        %430 = vmatpush1.bf16.msra.mxu0 0
        %431 = vmatprep.subr.bf16.mxu0 0
        %432 = vmatpush1.bf16.msra.mxu0 0
        %433 = vmatprep.subr.bf16.mxu0 0
        %434 = vmatpush1.bf16.msra.mxu0 0
        %435 = vmatprep.subr.bf16.mxu0 0
        %436 = vmatpush1.bf16.msra.mxu0 0
        %437 = vmatprep.mubr.bf16.mxu0 %v403
        %438 = vmatmul.mubr.bf16.gmra.mrb[0].mxu0 %v244
        %v439 = vpop.f32.mrb[0].mxu0
        %v440 = vadd.f32 %v275, %v439
        %v441 = vpop.f32.mrb[0].mxu0
        %v442 = vadd.f32 %v279, %v441
        %v443 = vpop.f32.mrb[0].mxu0
        %v444 = vadd.f32 %v275, %v443
        %v445 = vpop.f32.mrb[0].mxu0
        %v446 = vadd.f32 %v279, %v445
        %447 = vdwg.mxu0
        %v448 = vmax.f32 %v440, 0.0
        %v449 = vmax.f32 %v442, 0.0
        %v450 = vmax.f32 %v444, 0.0
        %v451 = vmax.f32 %v446, 0.0
        %452 = vst [vmem:[%s203] sm:$0xff] %v448
        %453 = vst [vmem:[%s203 + $0x8] sm:$0xff] %v449
        %454 = vst [vmem:[%s203 + $0x10] sm:$0xff] %v450
        %455 = vst [vmem:[%s203 + $0x18] sm:$0xff] %v451
        %s456 = sand.u32 %s97, 1
        %s457 = scalar_lea.sflag [#allocation5], %s456
        %s458 = sand.u32 %s97, 1
        %s459 = smul.addr %s458, 32
        %s460 = scalar_lea.vmem [#allocation8], %s459
        // Predicated region
        $region41: #{tpu_custom_call.1} parent=31 // pred_check
          %p461 = pneg %p107
        $region42: #{tpu_custom_call.1} parent=31 // pred_check_branch
          %463 = sbr.rel (%p461) target = $region44
        $region43: #{tpu_custom_call.1} parent=31 // pred_region
          %s465 = ssub.s32 512, 512
          %466 = vsyncadd %s457, %s465
          %s467 = smul.addr %s21, 4
          %s468 = smul.addr %s467, 128
          %s469 = scalar_lea.hbm %s3, %s468
          %s470 = sshll.u32 %s460, 4
          %s471 = int_to_ptr.vmem [resolvable:$true] %s470
          %476 = dma.vmem_to_hbm [thread:$0]  %s471, 512, %s469, %s457, 256, 256, 16
        $region44: #{tpu_custom_call.1} parent=31 // pred_fallthru
          _
      $region32: #{tpu_custom_call.1} parent=5 // pred_fallthru
        _
      %p477 = scmp.le.s32.totalorder 2, %s16
      // Predicated region
      $region45: #{tpu_custom_call.1} parent=5 // pred_check
        %p478 = pneg %p477
      $region46: #{tpu_custom_call.1} parent=5 // pred_check_branch
        %480 = sbr.rel (%p478) target = $region48
      $region47: #{tpu_custom_call.1} parent=5 // pred_region
        %s481 = ssub.s32 %s16, 2
        // Predicated region
        $region49: #{tpu_custom_call.1} parent=47 // pred_check
          %p482 = pneg %p113
        $region50: #{tpu_custom_call.1} parent=47 // pred_check_branch
          %484 = sbr.rel (%p482) target = $region52
        $region51: #{tpu_custom_call.1} parent=47 // pred_region
          %s485 = sand.u32 %s98, 1
          %s486 = scalar_lea.sflag [#allocation5], %s485
          %s487 = sand.u32 %s98, 1
          %s488 = smul.addr %s487, 32
          %s489 = scalar_lea.vmem [#allocation8], %s488
          %490 = dma.done %s486, 512
        $region52: #{tpu_custom_call.1} parent=47 // pred_fallthru
          _
      $region48: #{tpu_custom_call.1} parent=5 // pred_fallthru
        _
    $region6: #{tpu_custom_call.1} parent=1 // loop_footer
      %s20 = sadd.s32 1, %s16
    $region7: #{tpu_custom_call.1} parent=1 // loop_footer_branch
      %15 = sbr.rel target = $region3
    $region8: #{tpu_custom_call.1} parent=1 // loop_exit
      _
    %491 = vsyncpa [#allocation4], 1
    %s492 = scalar_lea.sflag [#allocation4], 1
    %493 = vsyncpa %s492, 1
    %494 = vsyncpa [#allocation7], 1
    %495 = vsyncpa [#allocation5], 1
    %s496 = scalar_lea.sflag [#allocation5], 1
    %497 = vsyncpa %s496, 1

</llo_original>
